<compile_context>
chip_gen: v7x
topology: tpu7x:2x2x1
jax: 0.10.0
libtpu: 0.0.40
codegen_flags: <defaults>
</compile_context>

<pallas_src>
import jax
import jax.numpy as jnp
from jax.experimental import pallas as pl
from jax.experimental.pallas import tpu as pltpu

LANE = 128


def _round_up(n, m):
    return ((n + m - 1) // m) * m


# ----------------------------------------------------------------------------
# Pallas kernel: one (TB, F) f32 batch tile -> (TB, C) f32 logits tile.
# ----------------------------------------------------------------------------
def m6a_kernel(x_ref,                      # (TB, F)    f32
               hw1_ref, hb1_ref,           # (F, H1p)   bf16 / (1, H1p) f32
               hw2_ref, hb2_ref,           # (H1p, H2p) bf16 / (1, H2p) f32
               ow_ref, ob_ref,             # (H2p, C)   bf16 / (1, C)   f32
               out_ref):                   # (TB, C)    f32
    # Attention block is an exact identity for 2-D input (softmax over a
    # length-1 axis == 1.0), so it is omitted here (verified vs. the reference).
    # x arrives f32 (saves a full wrapper-side cast pass over HBM); the VPU
    # cast to bf16 is free slot-wise and lets the MXU run bf16 with f32 acc.
    x = x_ref[...].astype(jnp.bfloat16)

    # Hidden layer 1: Linear -> ReLU   (Dropout is identity in eval mode)
    h1 = jnp.dot(x, hw1_ref[...], preferred_element_type=jnp.float32) + hb1_ref[...]
    h1 = jnp.maximum(h1, 0.0).astype(jnp.bfloat16)                    # (TB, H1p)

    # Hidden layer 2: Linear -> ReLU
    h2 = jnp.dot(h1, hw2_ref[...], preferred_element_type=jnp.float32) + hb2_ref[...]
    h2 = jnp.maximum(h2, 0.0).astype(jnp.bfloat16)                    # (TB, H2p)

    # Output layer (kept 2 lanes wide: HBM write is only 8 B/row; lane-packing
    # the logits would complicate the wrapper for negligible gain at this size).
    out_ref[...] = (jnp.dot(h2, ow_ref[...], preferred_element_type=jnp.float32)
                    + ob_ref[...])                                    # (TB, C)


# ----------------------------------------------------------------------------
# One-time weight preparation (hoisted out of the per-forward path).
# Lane-dense zero-padded bf16 weight tiles; exact because the padded lanes
# stay 0 through Linear(0-cols) + 0-bias + ReLU and contribute 0 downstream.
# ----------------------------------------------------------------------------
def prepare_params(params, lane=LANE):
    F, H1 = params["hw1"].shape
    H2 = params["hw2"].shape[1]
    C = params["ow"].shape[1]
    H1p = _round_up(H1, lane)
    H2p = _round_up(H2, lane)

    hw1 = jnp.zeros((F, H1p), jnp.bfloat16).at[:, :H1].set(
        params["hw1"].astype(jnp.bfloat16))
    hb1 = jnp.zeros((1, H1p), jnp.float32).at[:, :H1].set(params["hb1"])
    hw2 = jnp.zeros((H1p, H2p), jnp.bfloat16).at[:H1, :H2].set(
        params["hw2"].astype(jnp.bfloat16))
    hb2 = jnp.zeros((1, H2p), jnp.float32).at[:, :H2].set(params["hb2"])
    ow = jnp.zeros((H2p, C), jnp.bfloat16).at[:H2, :].set(
        params["ow"].astype(jnp.bfloat16))
    ob = params["ob"].reshape(1, C).astype(jnp.float32)

    return {"hw1": hw1, "hb1": hb1, "hw2": hw2, "hb2": hb2, "ow": ow, "ob": ob,
            "dims": (F, H1p, H2p, C)}


def _choose_batch_tile(B, block_b):
    """Batch tile: big enough to amortize per-step overhead; >= 2 grid steps
    whenever B allows it so v7x's two TensorCores both get work."""
    block_b = max(8, _round_up(block_b, 8))
    if B <= 16:
        return B                                   # single full-extent block
    if B <= block_b:
        return _round_up((B + 1) // 2, 8)          # exactly 2 grid steps
    return block_b


def _vmem_budget_bytes(tb, F, H1p, H2p, C):
    """Conservative VMEM estimate for the chosen tile (lane/sublane padded)."""
    lanes = lambda n: _round_up(n, LANE)
    x_blk = tb * lanes(F) * 4 * 2                             # f32 x, 2 buffers
    out_blk = tb * lanes(C) * 4 * 2                           # f32 out, 2 buffers
    w = (_round_up(F, 16) * H1p + H1p * H2p + H2p * lanes(C)) * 2 * 2   # bf16 wts
    b = 8 * (H1p + H2p + lanes(C)) * 4 * 2                    # f32 biases
    inter = tb * (lanes(F) * 2 + H1p * (4 + 2) + H2p * (4 + 2))  # casts + h1/h2
    return x_blk + out_blk + w + b + inter


# ----------------------------------------------------------------------------
# Wrapper: batch-tiled grid, ragged last tile via masking, explicit VMEM budget.
# ----------------------------------------------------------------------------
def m6a_predictor_forward(x, prepped, *, block_b=2048):
    """Forward pass. `prepped` comes from prepare_params() (computed once)."""
    B, F = x.shape
    Fp, H1p, H2p, C = prepped["dims"]
    assert F == Fp, "input feature dim does not match prepared weights"

    tb = _choose_batch_tile(B, block_b)
    grid = ((B + tb - 1) // tb,)
    # Ragged last tile: Pallas masks OOB rows.  The kernel has no cross-row
    # ops, so garbage rows never contaminate valid ones; OOB stores are dropped.

    x_spec = pl.BlockSpec((tb, F), lambda i: (i, 0))
    out_spec = pl.BlockSpec((tb, C), lambda i: (i, 0))

    def resident(a):  # whole-array block, grid-invariant -> DMA'd only once
        return pl.BlockSpec(a.shape, lambda i: (0, 0))

    x = x.astype(jnp.float32)  # identity for f32 inputs (no extra HBM pass)

    weight_bytes = (
        (prepped["hw1"].size + prepped["hw2"].size + prepped["ow"].size) * 2
        + (prepped["hb1"].size + prepped["hb2"].size + prepped["ob"].size) * 4)
    cost = pl.CostEstimate(
        flops=2 * B * (F * H1p + H1p * H2p + H2p * C),
        transcendentals=0,
        bytes_accessed=B * F * 4 + B * C * 4 + weight_bytes,
    )

    vmem_limit = int(min(max(2 * _vmem_budget_bytes(tb, F, H1p, H2p, C), 32 << 20),
                         100 << 20))

    return pl.pallas_call(
        m6a_kernel,
        out_shape=jax.ShapeDtypeStruct((B, C), jnp.float32),
        grid=grid,
        in_specs=[x_spec,
                  resident(prepped["hw1"]), resident(prepped["hb1"]),
                  resident(prepped["hw2"]), resident(prepped["hb2"]),
                  resident(prepped["ow"]), resident(prepped["ob"])],
        out_specs=out_spec,
        compiler_params=pltpu.CompilerParams(
            dimension_semantics=("parallel",),
            vmem_limit_bytes=vmem_limit),
        cost_estimate=cost,
    )(x, prepped["hw1"], prepped["hb1"], prepped["hw2"], prepped["hb2"],
      prepped["ow"], prepped["ob"])


# ----------------------------------------------------------------------------
# Deterministic parameters (M6APredictor(hidden_layers=[64, 32], input_dim=56,
# num_classes=2, attention_hidden_dim=32)); weights stored (in, out).
# ----------------------------------------------------------------------------
def make_params(key, input_dim=56, hidden_layers=(64, 32),
                num_classes=2, attention_hidden_dim=32):
    ks = jax.random.split(key, 8)
    h1, h2 = hidden_layers

    def w(k, shape, fan_in):
        return jax.random.normal(k, shape, jnp.float32) / jnp.sqrt(fan_in)

    return {
        # Attention (kept for the reference check; exact identity for 2-D input)
        "aw1": w(ks[0], (input_dim, attention_hidden_dim), input_dim),
        "ab1": jnp.zeros((1, attention_hidden_dim), jnp.float32) + 0.01,
        "aw2": w(ks[1], (1, attention_hidden_dim), attention_hidden_dim),
        # Hidden layer 1: Linear(input_dim, h1)
        "hw1": w(ks[2], (input_dim, h1), input_dim),
        "hb1": jnp.zeros((1, h1), jnp.float32) + 0.02,
        # Hidden layer 2: Linear(h1, h2)
        "hw2": w(ks[3], (h1, h2), h1),
        "hb2": jnp.zeros((1, h2), jnp.float32) + 0.03,
        # Output layer: Linear(h2, num_classes)
        "ow": w(ks[4], (h2, num_classes), h2),
        "ob": jnp.zeros((1, num_classes), jnp.float32) + 0.04,
    }


# ----------------------------------------------------------------------------
# Pure-JAX f32 reference (mirrors the PyTorch forward in eval mode, attention
# included — validating that skipping it in the kernel is exact).
# ----------------------------------------------------------------------------
def reference_forward(x, p):
    a_h = jnp.tanh(x @ p["aw1"] + p["ab1"])
    scores = jnp.sum(a_h * p["aw2"], axis=-1, keepdims=True)
    weights = jax.nn.softmax(scores, axis=1)     # length-1 axis -> all ones
    xa = x * weights
    h1 = jax.nn.relu(xa @ p["hw1"] + p["hb1"])   # Dropout: identity in eval
    h2 = jax.nn.relu(h1 @ p["hw2"] + p["hb2"])
    return h2 @ p["ow"] + p["ob"]


if __name__ == "__main__":
    key = jax.random.PRNGKey(0)
    k_x, k_p = jax.random.split(key)

    B, INPUT_DIM = 8, 56
    x = jax.random.normal(k_x, (B, INPUT_DIM), jnp.float32)
    params = make_params(k_p, input_dim=INPUT_DIM)

    # Weight padding / bf16 casting done once (hoisted out of the forward path).
    prepped = prepare_params(params)

    logits = m6a_predictor_forward(x, prepped)
    logits = jax.block_until_ready(logits)

    ref = reference_forward(x, params)
    assert logits.shape == (B, 2)
    # bf16 weight/activation streaming with f32 accumulation -> loosened tolerance.
    assert jnp.allclose(logits, ref, atol=3e-2, rtol=3e-2), "mismatch vs reference"

    print("KERNEL_OK")
</pallas_src>

<mosaic_0001>
module attributes {stable_mosaic.version = 11 : i64} {
  func.func @m6a_kernel(%arg0: i32, %arg1: memref<8x56xf32, #tpu.memory_space<vmem>>, %arg2: memref<56x128xbf16, #tpu.memory_space<vmem>>, %arg3: memref<1x128xf32, #tpu.memory_space<vmem>>, %arg4: memref<128x128xbf16, #tpu.memory_space<vmem>>, %arg5: memref<1x128xf32, #tpu.memory_space<vmem>>, %arg6: memref<128x2xbf16, #tpu.memory_space<vmem>>, %arg7: memref<1x2xf32, #tpu.memory_space<vmem>>, %arg8: memref<8x2xf32, #tpu.memory_space<vmem>>) attributes {dimension_semantics = [#tpu.dimension_semantics<parallel>], iteration_bounds = array<i64: 1>, scalar_prefetch = 0 : i64, scratch_operands = 0 : i64, tpu.core_type = #tpu.core_type<tc>, window_params = [{transform_indices = @transform_0, window_bounds = array<i64: 8, 56>}, {pipeline_mode = #tpu.pipeline_mode<synchronous>, transform_indices = @transform_1, window_bounds = array<i64: 56, 128>}, {pipeline_mode = #tpu.pipeline_mode<synchronous>, transform_indices = @transform_2, window_bounds = array<i64: 1, 128>}, {pipeline_mode = #tpu.pipeline_mode<synchronous>, transform_indices = @transform_3, window_bounds = array<i64: 128, 128>}, {pipeline_mode = #tpu.pipeline_mode<synchronous>, transform_indices = @transform_4, window_bounds = array<i64: 1, 128>}, {pipeline_mode = #tpu.pipeline_mode<synchronous>, transform_indices = @transform_5, window_bounds = array<i64: 128, 2>}, {pipeline_mode = #tpu.pipeline_mode<synchronous>, transform_indices = @transform_6, window_bounds = array<i64: 1, 2>}, {transform_indices = @transform_7, window_bounds = array<i64: 8, 2>}]} {
    %c0 = arith.constant 0 : index
    %c0_0 = arith.constant 0 : index
    %0 = vector.load %arg1[%c0, %c0_0] : memref<8x56xf32, #tpu.memory_space<vmem>>, vector<8x56xf32>
    %1 = arith.truncf %0 : vector<8x56xf32> to vector<8x56xbf16>
    %c0_1 = arith.constant 0 : index
    %c0_2 = arith.constant 0 : index
    %2 = vector.load %arg2[%c0_1, %c0_2] : memref<56x128xbf16, #tpu.memory_space<vmem>>, vector<56x128xbf16>
    %cst = arith.constant dense<0.000000e+00> : vector<8x128xf32>
    %3 = tpu.matmul %1, %2, %cst {dimension_numbers = #tpu.dot_dimension_numbers<[1], [0], [0], [1], [0, 0, 1, 1], [], []>} : vector<8x56xbf16>, vector<56x128xbf16>, vector<8x128xf32> -> vector<8x128xf32>
    %c0_3 = arith.constant 0 : index
    %c0_4 = arith.constant 0 : index
    %4 = vector.load %arg3[%c0_3, %c0_4] : memref<1x128xf32, #tpu.memory_space<vmem>>, vector<1x128xf32>
    %5 = vector.broadcast %4 : vector<1x128xf32> to vector<8x128xf32>
    %6 = arith.addf %3, %5 : vector<8x128xf32>
    %cst_5 = arith.constant 0.000000e+00 : f32
    %7 = vector.broadcast %cst_5 : f32 to vector<8x128xf32>
    %8 = arith.maximumf %6, %7 : vector<8x128xf32>
    %9 = arith.truncf %8 : vector<8x128xf32> to vector<8x128xbf16>
    %c0_6 = arith.constant 0 : index
    %c0_7 = arith.constant 0 : index
    %10 = vector.load %arg4[%c0_6, %c0_7] : memref<128x128xbf16, #tpu.memory_space<vmem>>, vector<128x128xbf16>
    %cst_8 = arith.constant dense<0.000000e+00> : vector<8x128xf32>
    %11 = tpu.matmul %9, %10, %cst_8 {dimension_numbers = #tpu.dot_dimension_numbers<[1], [0], [0], [1], [0, 0, 1, 1], [], []>} : vector<8x128xbf16>, vector<128x128xbf16>, vector<8x128xf32> -> vector<8x128xf32>
    %c0_9 = arith.constant 0 : index
    %c0_10 = arith.constant 0 : index
    %12 = vector.load %arg5[%c0_9, %c0_10] : memref<1x128xf32, #tpu.memory_space<vmem>>, vector<1x128xf32>
    %13 = vector.broadcast %12 : vector<1x128xf32> to vector<8x128xf32>
    %14 = arith.addf %11, %13 : vector<8x128xf32>
    %cst_11 = arith.constant 0.000000e+00 : f32
    %15 = vector.broadcast %cst_11 : f32 to vector<8x128xf32>
    %16 = arith.maximumf %14, %15 : vector<8x128xf32>
    %17 = arith.truncf %16 : vector<8x128xf32> to vector<8x128xbf16>
    %c0_12 = arith.constant 0 : index
    %c0_13 = arith.constant 0 : index
    %18 = vector.load %arg6[%c0_12, %c0_13] : memref<128x2xbf16, #tpu.memory_space<vmem>>, vector<128x2xbf16>
    %cst_14 = arith.constant dense<0.000000e+00> : vector<8x2xf32>
    %19 = tpu.matmul %17, %18, %cst_14 {dimension_numbers = #tpu.dot_dimension_numbers<[1], [0], [0], [1], [0, 0, 1, 1], [], []>} : vector<8x128xbf16>, vector<128x2xbf16>, vector<8x2xf32> -> vector<8x2xf32>
    %c0_15 = arith.constant 0 : index
    %c0_16 = arith.constant 0 : index
    %20 = vector.load %arg7[%c0_15, %c0_16] : memref<1x2xf32, #tpu.memory_space<vmem>>, vector<1x2xf32>
    %21 = vector.broadcast %20 : vector<1x2xf32> to vector<8x2xf32>
    %22 = arith.addf %19, %21 : vector<8x2xf32>
    %c0_17 = arith.constant 0 : index
    %c0_18 = arith.constant 0 : index
    %23 = vector.load %arg8[%c0_17, %c0_18] : memref<8x2xf32, #tpu.memory_space<vmem>>, vector<8x2xf32>
    tpu.vector_store %arg8[%c0_17, %c0_18], %22 {strides = array<i32>} : memref<8x2xf32, #tpu.memory_space<vmem>>, vector<8x2xf32>,
    return
  }
  func.func @transform_0(%arg0: i32) -> (i32, i32) {
    %c0_i32 = arith.constant 0 : i32
    %c0_i32_0 = arith.constant 0 : i32
    return %arg0, %c0_i32 : i32, i32
  }
  func.func @transform_1(%arg0: i32) -> (i32, i32) {
    %c0_i32 = arith.constant 0 : i32
    %c0_i32_0 = arith.constant 0 : i32
    %c0_i32_1 = arith.constant 0 : i32
    return %c0_i32, %c0_i32_0 : i32, i32
  }
  func.func @transform_2(%arg0: i32) -> (i32, i32) {
    %c0_i32 = arith.constant 0 : i32
    %c0_i32_0 = arith.constant 0 : i32
    %c0_i32_1 = arith.constant 0 : i32
    return %c0_i32, %c0_i32_0 : i32, i32
  }
  func.func @transform_3(%arg0: i32) -> (i32, i32) {
    %c0_i32 = arith.constant 0 : i32
    %c0_i32_0 = arith.constant 0 : i32
    %c0_i32_1 = arith.constant 0 : i32
    return %c0_i32, %c0_i32_0 : i32, i32
  }
  func.func @transform_4(%arg0: i32) -> (i32, i32) {
    %c0_i32 = arith.constant 0 : i32
    %c0_i32_0 = arith.constant 0 : i32
    %c0_i32_1 = arith.constant 0 : i32
    return %c0_i32, %c0_i32_0 : i32, i32
  }
  func.func @transform_5(%arg0: i32) -> (i32, i32) {
    %c0_i32 = arith.constant 0 : i32
    %c0_i32_0 = arith.constant 0 : i32
    %c0_i32_1 = arith.constant 0 : i32
    return %c0_i32, %c0_i32_0 : i32, i32
  }
  func.func @transform_6(%arg0: i32) -> (i32, i32) {
    %c0_i32 = arith.constant 0 : i32
    %c0_i32_0 = arith.constant 0 : i32
    %c0_i32_1 = arith.constant 0 : i32
    return %c0_i32, %c0_i32_0 : i32, i32
  }
  func.func @transform_7(%arg0: i32) -> (i32, i32) {
    %c0_i32 = arith.constant 0 : i32
    %c0_i32_0 = arith.constant 0 : i32
    return %arg0, %c0_i32 : i32, i32
  }
}

</mosaic_0001>

<llo_original>
// kernel: tpu_custom_call.1
$region0: #{tpu_custom_call.1}
  #allocation0 [shape = 'u32[]', space=smem, size = 0x4, offset = 0x4, fixed_abs, tag = 'smem constant byte address 0x4 - core index']
  #allocation1 [shape = 'u32[144,128]{1,0:T(1,128)}', space=vmem, size = 0x12000, scoped, tag = 'internal scratch']
  %s0 = inlined_call_operand.vmem [shape: f32[8,56], index: 0, kind: input, shape index: {}]
  %s1 = inlined_call_operand.hbm [shape: bf16[56,128], index: 1, kind: input, shape index: {}]
  %s2 = inlined_call_operand.vmem [shape: f32[1,128], index: 2, kind: input, shape index: {}]
  %s3 = inlined_call_operand.vmem [shape: bf16[128,128], index: 3, kind: input, shape index: {}]
  %s4 = inlined_call_operand.vmem [shape: f32[1,128], index: 4, kind: input, shape index: {}]
  %s5 = inlined_call_operand.vmem [shape: bf16[128,2], index: 5, kind: input, shape index: {}]
  %s6 = inlined_call_operand.vmem [shape: f32[1,2], index: 6, kind: input, shape index: {}]
  %s7 = inlined_call_operand.vmem [shape: f32[8,2], index: 7, kind: output, shape index: {}]
  %s8 = sld [smem:[#allocation0]]
  $region42: #{tpu_custom_call.1} parent=0
    _
  %s10 = ssub.s32 1, %s8
  %s11 = scalar_select 0, %s10, %s8
  $region1: #{tpu_custom_call.1} parent=0
    #allocation2 [shape = 'u8[14336]{0}', space=vmem, size = 0x3800, scoped, tag = 'input window, operand 1, single buffered']
    #allocation3 [shape = 's32[1]{0}', space=sflag, size = 0x4, scoped, tag = 'scoped memory for tpu_custom_call.1']
    %12 = vsyncpa [#allocation3], 0
    // Predicated region
    $region2: #{tpu_custom_call.1} parent=1 // pred_check
      _
    $region3: #{tpu_custom_call.1} parent=1 // pred_check_branch
      %14 = sbr.rel (0) target = $region5
    $region4: #{tpu_custom_call.1} parent=1 // pred_region
      _
    $region5: #{tpu_custom_call.1} parent=1 // pred_fallthru
      _
    // Predicated region
    $region6: #{tpu_custom_call.1} parent=1 // pred_check
      _
    $region7: #{tpu_custom_call.1} parent=1 // pred_check_branch
      %16 = sbr.rel (0) target = $region9
    $region8: #{tpu_custom_call.1} parent=1 // pred_region
      %s18 = ssub.s32 448, 448
      %19 = vsyncadd [#allocation3], %s18
      %s20 = sshll.u32 [#allocation2], 4
      %s21 = int_to_ptr.vmem [resolvable:$true] %s20
      %26 = dma.hbm_to_vmem [thread:$0]  %s1, 448, %s21, [#allocation3], 64, 64, 4
    $region9: #{tpu_custom_call.1} parent=1 // pred_fallthru
      _
    // Predicated region
    $region10: #{tpu_custom_call.1} parent=1 // pred_check
      _
    $region11: #{tpu_custom_call.1} parent=1 // pred_check_branch
      %28 = sbr.rel (0) target = $region13
    $region12: #{tpu_custom_call.1} parent=1 // pred_region
      _
    $region13: #{tpu_custom_call.1} parent=1 // pred_fallthru
      _
    // Predicated region
    $region14: #{tpu_custom_call.1} parent=1 // pred_check
      _
    $region15: #{tpu_custom_call.1} parent=1 // pred_check_branch
      %30 = sbr.rel (0) target = $region17
    $region16: #{tpu_custom_call.1} parent=1 // pred_region
      _
    $region17: #{tpu_custom_call.1} parent=1 // pred_fallthru
      _
    // Predicated region
    $region18: #{tpu_custom_call.1} parent=1 // pred_check
      _
    $region19: #{tpu_custom_call.1} parent=1 // pred_check_branch
      %32 = sbr.rel (0) target = $region21
    $region20: #{tpu_custom_call.1} parent=1 // pred_region
      _
    $region21: #{tpu_custom_call.1} parent=1 // pred_fallthru
      _
    // Predicated region
    $region22: #{tpu_custom_call.1} parent=1 // pred_check
      _
    $region23: #{tpu_custom_call.1} parent=1 // pred_check_branch
      %34 = sbr.rel (0) target = $region25
    $region24: #{tpu_custom_call.1} parent=1 // pred_region
      _
    $region25: #{tpu_custom_call.1} parent=1 // pred_fallthru
      _
    // Predicated region
    $region26: #{tpu_custom_call.1} parent=1 // pred_check
      _
    $region27: #{tpu_custom_call.1} parent=1 // pred_check_branch
      %36 = sbr.rel (0) target = $region29
    $region28: #{tpu_custom_call.1} parent=1 // pred_region
      _
    $region29: #{tpu_custom_call.1} parent=1 // pred_fallthru
      _
    // Predicated region
    $region30: #{tpu_custom_call.1} parent=1 // pred_check
      _
    $region31: #{tpu_custom_call.1} parent=1 // pred_check_branch
      %38 = sbr.rel (0) target = $region33
    $region32: #{tpu_custom_call.1} parent=1 // pred_region
      %39 = dma.done [#allocation3], 448
    $region33: #{tpu_custom_call.1} parent=1 // pred_fallthru
      _
    %v41 = vld [vmem:[%s0] sm:$0xff]
    %v42 = vpack.c.bf16 %v41, %v41
    %v43 = vld [vmem:[#allocation2] sm:$0xf]
    %v44 = vld [vmem:[#allocation2 + $0x4] sm:$0xf]
    %v45 = vld [vmem:[#allocation2 + $0x8] sm:$0xf]
    %v46 = vld [vmem:[#allocation2 + $0xc] sm:$0xf]
    %v47 = vld [vmem:[#allocation2 + $0x10] sm:$0xf]
    %v48 = vld [vmem:[#allocation2 + $0x14] sm:$0xf]
    %v49 = vld [vmem:[#allocation2 + $0x18] sm:$0xf]
    %v50 = vld [vmem:[%s2] sm:$0x1]
    %v52 = vlaneseq
    %v53 = vshrl.u32 %v52, 7
    %v54 = vsub.s32 0, %v53
    %v55 = vrot.slane %v50, %v54
    %v64 = vunpack.c.l.b16 %v43
    %v65 = vunpack.c.l.b16 %v44
    %v66 = vunpack.c.l.b16 %v45
    %v67 = vunpack.c.l.b16 %v46
    %v68 = vunpack.c.l.b16 %v47
    %v69 = vunpack.c.l.b16 %v48
    %v70 = vunpack.c.l.b16 %v49
    %v71 = vpack.c.b16 %v65, %v64
    %v72 = vpack.c.b16 %v67, %v66
    %v73 = vpack.c.b16 %v69, %v68
    %v74 = vpack.c.b16 %v70, %v70
    %vm78 = vcmask 457728
    %v80 = vsel %vm78, %v42, 0
    %vm82 = vcmask 1043456
    %v84 = vsel %vm82, %v74, 0
    %86 = vmatprep.subr.bf16.mxu0 0
    %87 = vmatpush1.bf16.msra.mxu0 %v71
    %88 = vmatprep.subr.bf16.mxu0 0
    %89 = vmatpush1.bf16.msra.mxu0 %v72
    %90 = vmatprep.subr.bf16.mxu0 0
    %91 = vmatpush1.bf16.msra.mxu0 %v73
    %92 = vmatprep.subr.bf16.mxu0 0
    %93 = vmatpush1.bf16.msra.mxu0 %v84
    %94 = vmatprep.subr.bf16.mxu0 0
    %95 = vmatpush1.bf16.msra.mxu0 0
    %96 = vmatprep.subr.bf16.mxu0 0
    %97 = vmatpush1.bf16.msra.mxu0 0
    %98 = vmatprep.subr.bf16.mxu0 0
    %99 = vmatpush1.bf16.msra.mxu0 0
    %100 = vmatprep.subr.bf16.mxu0 0
    %101 = vmatpush1.bf16.msra.mxu0 0
    %102 = vmatprep.subr.bf16.mxu0 0
    %103 = vmatpush1.bf16.msra.mxu0 0
    %104 = vmatprep.subr.bf16.mxu0 0
    %105 = vmatpush1.bf16.msra.mxu0 0
    %106 = vmatprep.subr.bf16.mxu0 0
    %107 = vmatpush1.bf16.msra.mxu0 0
    %108 = vmatprep.subr.bf16.mxu0 0
    %109 = vmatpush1.bf16.msra.mxu0 0
    %110 = vmatprep.subr.bf16.mxu0 0
    %111 = vmatpush1.bf16.msra.mxu0 0
    %112 = vmatprep.subr.bf16.mxu0 0
    %113 = vmatpush1.bf16.msra.mxu0 0
    %114 = vmatprep.subr.bf16.mxu0 0
    %115 = vmatpush1.bf16.msra.mxu0 0
    %116 = vmatprep.subr.bf16.mxu0 0
    %117 = vmatpush1.bf16.msra.mxu0 0
    %118 = vmatprep.mubr.bf16.mxu0 0
    %119 = vmatmul.mubr.bf16.gmra.mrb[0].mxu0 %v80
    %v120 = vpop.f32.mrb[0].mxu0
    %v121 = vadd.f32 %v55, %v120
    %v122 = vpop.f32.mrb[0].mxu0
    %v123 = vpop.f32.mrb[0].mxu0
    %v124 = vpop.f32.mrb[0].mxu0
    %125 = vdwg.mxu0
    %v126 = vmax.f32 %v121, 0.0
    %v127 = vpack.c.bf16 %v126, %v126
    %v128 = vld [vmem:[%s3] sm:$0xf]
    %v129 = vld [vmem:[%s3 + $0x4] sm:$0xf]
    %v130 = vld [vmem:[%s3 + $0x8] sm:$0xf]
    %v131 = vld [vmem:[%s3 + $0xc] sm:$0xf]
    %v132 = vld [vmem:[%s3 + $0x10] sm:$0xf]
    %v133 = vld [vmem:[%s3 + $0x14] sm:$0xf]
    %v134 = vld [vmem:[%s3 + $0x18] sm:$0xf]
    %v135 = vld [vmem:[%s3 + $0x1c] sm:$0xf]
    %v136 = vld [vmem:[%s3 + $0x20] sm:$0xf]
    %v137 = vld [vmem:[%s3 + $0x24] sm:$0xf]
    %v138 = vld [vmem:[%s3 + $0x28] sm:$0xf]
    %v139 = vld [vmem:[%s3 + $0x2c] sm:$0xf]
    %v140 = vld [vmem:[%s3 + $0x30] sm:$0xf]
    %v141 = vld [vmem:[%s3 + $0x34] sm:$0xf]
    %v142 = vld [vmem:[%s3 + $0x38] sm:$0xf]
    %v143 = vld [vmem:[%s3 + $0x3c] sm:$0xf]
    %v144 = vld [vmem:[%s4] sm:$0x1]
    %v146 = vlaneseq
    %v147 = vshrl.u32 %v146, 7
    %v148 = vsub.s32 0, %v147
    %v149 = vrot.slane %v144, %v148
    %v167 = vunpack.c.l.b16 %v128
    %v168 = vunpack.c.l.b16 %v129
    %v169 = vunpack.c.l.b16 %v130
    %v170 = vunpack.c.l.b16 %v131
    %v171 = vunpack.c.l.b16 %v132
    %v172 = vunpack.c.l.b16 %v133
    %v173 = vunpack.c.l.b16 %v134
    %v174 = vunpack.c.l.b16 %v135
    %v175 = vunpack.c.l.b16 %v136
    %v176 = vunpack.c.l.b16 %v137
    %v177 = vunpack.c.l.b16 %v138
    %v178 = vunpack.c.l.b16 %v139
    %v179 = vunpack.c.l.b16 %v140
    %v180 = vunpack.c.l.b16 %v141
    %v181 = vunpack.c.l.b16 %v142
    %v182 = vunpack.c.l.b16 %v143
    %v183 = vpack.c.b16 %v168, %v167
    %v184 = vpack.c.b16 %v170, %v169
    %v185 = vpack.c.b16 %v172, %v171
    %v186 = vpack.c.b16 %v174, %v173
    %v187 = vpack.c.b16 %v176, %v175
    %v188 = vpack.c.b16 %v178, %v177
    %v189 = vpack.c.b16 %v180, %v179
    %v190 = vpack.c.b16 %v182, %v181
    %199 = vmatprep.subr.bf16.mxu0 0
    %200 = vmatpush1.bf16.msra.mxu0 %v183
    %201 = vmatprep.subr.bf16.mxu0 0
    %202 = vmatpush1.bf16.msra.mxu0 %v184
    %203 = vmatprep.subr.bf16.mxu0 0
    %204 = vmatpush1.bf16.msra.mxu0 %v185
    %205 = vmatprep.subr.bf16.mxu0 0
    %206 = vmatpush1.bf16.msra.mxu0 %v186
    %207 = vmatprep.subr.bf16.mxu0 0
    %208 = vmatpush1.bf16.msra.mxu0 %v187
    %209 = vmatprep.subr.bf16.mxu0 0
    %210 = vmatpush1.bf16.msra.mxu0 %v188
    %211 = vmatprep.subr.bf16.mxu0 0
    %212 = vmatpush1.bf16.msra.mxu0 %v189
    %213 = vmatprep.subr.bf16.mxu0 0
    %214 = vmatpush1.bf16.msra.mxu0 %v190
    %215 = vmatprep.subr.bf16.mxu0 0
    %216 = vmatpush1.bf16.msra.mxu0 0
    %217 = vmatprep.subr.bf16.mxu0 0
    %218 = vmatpush1.bf16.msra.mxu0 0
    %219 = vmatprep.subr.bf16.mxu0 0
    %220 = vmatpush1.bf16.msra.mxu0 0
    %221 = vmatprep.subr.bf16.mxu0 0
    %222 = vmatpush1.bf16.msra.mxu0 0
    %223 = vmatprep.subr.bf16.mxu0 0
    %224 = vmatpush1.bf16.msra.mxu0 0
    %225 = vmatprep.subr.bf16.mxu0 0
    %226 = vmatpush1.bf16.msra.mxu0 0
    %227 = vmatprep.subr.bf16.mxu0 0
    %228 = vmatpush1.bf16.msra.mxu0 0
    %229 = vmatprep.subr.bf16.mxu0 0
    %230 = vmatpush1.bf16.msra.mxu0 0
    %231 = vmatprep.mubr.bf16.mxu0 0
    %232 = vmatmul.mubr.bf16.gmra.mrb[0].mxu0 %v127
    %v233 = vpop.f32.mrb[0].mxu0
    %v234 = vadd.f32 %v149, %v233
    %v235 = vpop.f32.mrb[0].mxu0
    %v236 = vpop.f32.mrb[0].mxu0
    %v237 = vpop.f32.mrb[0].mxu0
    %238 = vdwg.mxu0
    %v239 = vmax.f32 %v234, 0.0
    %v240 = vpack.c.bf16 %v239, %v239
    %v241 = vld [vmem:[%s5] sm:$0xf]
    %v242 = vld [vmem:[%s5 + $0x4] sm:$0xf]
    %v243 = vld [vmem:[%s5 + $0x8] sm:$0xf]
    %v244 = vld [vmem:[%s5 + $0xc] sm:$0xf]
    %v245 = vld [vmem:[%s5 + $0x10] sm:$0xf]
    %v246 = vld [vmem:[%s5 + $0x14] sm:$0xf]
    %v247 = vld [vmem:[%s5 + $0x18] sm:$0xf]
    %v248 = vld [vmem:[%s5 + $0x1c] sm:$0xf]
    %v249 = vld [vmem:[%s5 + $0x20] sm:$0xf]
    %v250 = vld [vmem:[%s5 + $0x24] sm:$0xf]
    %v251 = vld [vmem:[%s5 + $0x28] sm:$0xf]
    %v252 = vld [vmem:[%s5 + $0x2c] sm:$0xf]
    %v253 = vld [vmem:[%s5 + $0x30] sm:$0xf]
    %v254 = vld [vmem:[%s5 + $0x34] sm:$0xf]
    %v255 = vld [vmem:[%s5 + $0x38] sm:$0xf]
    %v256 = vld [vmem:[%s5 + $0x3c] sm:$0xf]
    %v257 = vld [vmem:[%s6] sm:$0x1]
    %v259 = vlaneseq
    %v260 = vshrl.u32 %v259, 7
    %v261 = vsub.s32 0, %v260
    %v262 = vrot.slane %v257, %v261
    %v280 = vunpack.c.l.b16 %v241
    %v281 = vunpack.c.l.b16 %v242
    %v282 = vunpack.c.l.b16 %v243
    %v283 = vunpack.c.l.b16 %v244
    %v284 = vunpack.c.l.b16 %v245
    %v285 = vunpack.c.l.b16 %v246
    %v286 = vunpack.c.l.b16 %v247
    %v287 = vunpack.c.l.b16 %v248
    %v288 = vunpack.c.l.b16 %v249
    %v289 = vunpack.c.l.b16 %v250
    %v290 = vunpack.c.l.b16 %v251
    %v291 = vunpack.c.l.b16 %v252
    %v292 = vunpack.c.l.b16 %v253
    %v293 = vunpack.c.l.b16 %v254
    %v294 = vunpack.c.l.b16 %v255
    %v295 = vunpack.c.l.b16 %v256
    %v296 = vpack.c.b16 %v281, %v280
    %v297 = vpack.c.b16 %v283, %v282
    %v298 = vpack.c.b16 %v285, %v284
    %v299 = vpack.c.b16 %v287, %v286
    %v300 = vpack.c.b16 %v289, %v288
    %v301 = vpack.c.b16 %v291, %v290
    %v302 = vpack.c.b16 %v293, %v292
    %v303 = vpack.c.b16 %v295, %v294
    %312 = vmatprep.subr.bf16.mxu0 0
    %313 = vmatpush1.bf16.msra.mxu0 %v296
    %314 = vmatprep.subr.bf16.mxu0 0
    %315 = vmatpush1.bf16.msra.mxu0 %v297
    %316 = vmatprep.subr.bf16.mxu0 0
    %317 = vmatpush1.bf16.msra.mxu0 %v298
    %318 = vmatprep.subr.bf16.mxu0 0
    %319 = vmatpush1.bf16.msra.mxu0 %v299
    %320 = vmatprep.subr.bf16.mxu0 0
    %321 = vmatpush1.bf16.msra.mxu0 %v300
    %322 = vmatprep.subr.bf16.mxu0 0
    %323 = vmatpush1.bf16.msra.mxu0 %v301
    %324 = vmatprep.subr.bf16.mxu0 0
    %325 = vmatpush1.bf16.msra.mxu0 %v302
    %326 = vmatprep.subr.bf16.mxu0 0
    %327 = vmatpush1.bf16.msra.mxu0 %v303
    %328 = vmatprep.subr.bf16.mxu0 0
    %329 = vmatpush1.bf16.msra.mxu0 0
    %330 = vmatprep.subr.bf16.mxu0 0
    %331 = vmatpush1.bf16.msra.mxu0 0
    %332 = vmatprep.subr.bf16.mxu0 0
    %333 = vmatpush1.bf16.msra.mxu0 0
    %334 = vmatprep.subr.bf16.mxu0 0
    %335 = vmatpush1.bf16.msra.mxu0 0
    %336 = vmatprep.subr.bf16.mxu0 0
    %337 = vmatpush1.bf16.msra.mxu0 0
    %338 = vmatprep.subr.bf16.mxu0 0
    %339 = vmatpush1.bf16.msra.mxu0 0
    %340 = vmatprep.subr.bf16.mxu0 0
    %341 = vmatpush1.bf16.msra.mxu0 0
    %342 = vmatprep.subr.bf16.mxu0 0
    %343 = vmatpush1.bf16.msra.mxu0 0
    %344 = vmatprep.mubr.bf16.mxu0 0
    %345 = vmatmul.mubr.bf16.gmra.mrb[0].mxu0 %v240
    %v346 = vpop.f32.mrb[0].mxu0
    %v347 = vadd.f32 %v262, %v346
    %v348 = vpop.f32.mrb[0].mxu0
    %v349 = vpop.f32.mrb[0].mxu0
    %v350 = vpop.f32.mrb[0].mxu0
    %351 = vdwg.mxu0
    %vm352 = vcmask 15360
    %353 = vst.msk [vmem:[%s7] sm:$0xff] %vm352, %v347
    // Predicated region
    $region34: #{tpu_custom_call.1} parent=1 // pred_check
      _
    $region35: #{tpu_custom_call.1} parent=1 // pred_check_branch
      %355 = sbr.rel (0) target = $region37
    $region36: #{tpu_custom_call.1} parent=1 // pred_region
      _
    $region37: #{tpu_custom_call.1} parent=1 // pred_fallthru
      _
    // Predicated region
    $region38: #{tpu_custom_call.1} parent=1 // pred_check
      _
    $region39: #{tpu_custom_call.1} parent=1 // pred_check_branch
      %357 = sbr.rel (0) target = $region41
    $region40: #{tpu_custom_call.1} parent=1 // pred_region
      _
    $region41: #{tpu_custom_call.1} parent=1 // pred_fallthru
      _
    %358 = vsyncpa [#allocation3], 1

</llo_original>
